<compile_context>
chip_gen: v5e
topology: v5e:2x2
jax: 0.10.0
libtpu: 0.0.40
codegen_flags: <defaults>
</compile_context>

<pallas_src>
import jax
import jax.numpy as jnp
from jax import lax
from jax.experimental import pallas as pl
from jax.experimental.pallas import tpu as pltpu


def _round_up(x, m):
    return (x + m - 1) // m * m


def _pick_tile_b(b_pad):
    """Batch-tile size: multiple of 8, divides b_pad, as large as possible
    (dense output writeback, few grid steps) while leaving >=2 tiles so both
    v7x TensorCores get work."""
    for cand in (512, 256, 128, 64, 32, 16, 8):
        if b_pad % cand == 0 and b_pad // cand >= 2:
            return cand
    for cand in (512, 256, 128, 64, 32, 16, 8):
        if b_pad % cand == 0:
            return cand
    return b_pad


def _make_kernel(n_emb, emb_meta, numeric_runs, tile_b):
    """emb_meta:     tuple of (out_col, feature_dim) per embedding feature.
    numeric_runs: tuple of (out_col, numeric_slot, run_len) for contiguous
                  runs of numeric columns (torch: indecs.unsqueeze(1).float())."""

    def kernel(ids_ref, num_ref, *rest):
        tab_refs = rest[:n_emb]
        out_ref = rest[n_emb]
        base = pl.multiple_of(pl.program_id(0) * tile_b, tile_b)

        # Numeric columns: one dense (tile_b, run) store per contiguous run.
        for out_col, slot, run in numeric_runs:
            out_ref[:, pl.ds(out_col, run)] = (
                num_ref[:, pl.ds(slot, run)].astype(out_ref.dtype))

        # Embedding gathers: tables are VMEM-resident; each lookup is a
        # dynamic-sublane load + a (1, D) store at a static column offset.
        def body(r, carry):
            for t, (col, dim) in enumerate(emb_meta):
                idx = ids_ref[t, base + r]                     # SMEM scalar
                row = tab_refs[t][pl.ds(idx, 1), :]            # (1, dim) VMEM vld
                out_ref[pl.ds(r, 1), pl.ds(col, dim)] = row.astype(out_ref.dtype)
            return carry

        lax.fori_loop(0, tile_b, body, 0, unroll=8)

    return kernel


def fused_feature_embedding(ids, numeric_block, tables, emb_meta, numeric_runs,
                            total_dim):
    """Single fused forward:
      ids:           (n_emb, B_pad) int32 -- clamped row ids (scalar-prefetched).
      numeric_block: (B_pad, n_num) float32 -- raw numeric columns (dummy if none).
      tables:        list of (V_f, D_f) float32 embedding tables (VMEM-resident).
    Returns (B_pad, d_pad) float32; caller trims rows/cols to torch output."""
    n_emb = len(tables)
    b_pad = numeric_block.shape[0]
    tile_b = _pick_tile_b(b_pad)
    n_tiles = b_pad // tile_b
    d_pad = max(128, _round_up(total_dim, 128))   # lane-dense output slab

    numeric_spec = pl.BlockSpec((tile_b, numeric_block.shape[1]),
                                lambda i, ids_ref: (i, 0))
    # Whole tables live in VMEM for the kernel's lifetime: no per-row HBM DMAs.
    table_specs = [pl.BlockSpec(memory_space=pltpu.MemorySpace.VMEM)
                   for _ in range(n_emb)]
    out_spec = pl.BlockSpec((tile_b, d_pad), lambda i, ids_ref: (i, 0))

    kernel = _make_kernel(n_emb, tuple(emb_meta), tuple(numeric_runs), tile_b)

    table_bytes = int(sum(t.size * t.dtype.itemsize for t in tables))
    io_bytes = int(table_bytes + ids.size * 4 + numeric_block.size * 4
                   + b_pad * d_pad * 4)
    # VMEM budget: resident tables + double-buffered output / numeric tiles.
    vmem_need = (table_bytes + 2 * tile_b * d_pad * 4
                 + 2 * tile_b * numeric_block.shape[1] * 4 + (2 << 20))
    # TODO(synk): tables that do not fit VMEM (v7x: 64 MiB/TC) need a manual
    # double-buffered HBM DMA-gather path instead of VMEM residency.
    vmem_limit = int(min(64 * 2**20, max(32 * 2**20, 2 * vmem_need)))

    out = pl.pallas_call(
        kernel,
        out_shape=jax.ShapeDtypeStruct((b_pad, d_pad), jnp.float32),
        grid_spec=pltpu.PrefetchScalarGridSpec(
            num_scalar_prefetch=1,
            grid=(n_tiles,),
            in_specs=[numeric_spec] + table_specs,
            out_specs=out_spec,
        ),
        compiler_params=pltpu.CompilerParams(
            dimension_semantics=("parallel",),
            vmem_limit_bytes=vmem_limit),
        cost_estimate=pl.CostEstimate(
            flops=0, transcendentals=0, bytes_accessed=io_bytes),
    )(ids, numeric_block, *tables)
    return out


class CriteoFeatureEmbeddingPallas:
    """JAX/Pallas port of CriteoFeatureEmbedding.forward (single fused kernel)."""

    def __init__(self, feature_map, key):
        self.feature_map = feature_map
        self.tables = {}
        for name, conf in feature_map["features_map"].items():
            if name == "label":
                continue
            key, sub = jax.random.split(key)
            # nn.Embedding default init: N(0, 1).
            self.tables[name] = jax.random.normal(
                sub, (conf["vocab_size"], conf["feature_dim"]), jnp.float32)

    def _is_numeric(self, name):
        # Same (fragile) substring rule as the torch module.
        return ("I" in name) and (not self.feature_map["is_numeric_bucket"])

    def __call__(self, X):
        names = [n for n in X if n != "label"]
        emb_meta, numeric_runs = [], []
        ids_rows, num_cols, tables = [], [], []
        col = 0
        batch = None
        for name in names:
            idx = X[name]
            batch = idx.shape[0] if batch is None else batch
            if self._is_numeric(name):
                if numeric_runs and numeric_runs[-1][0] + numeric_runs[-1][2] == col:
                    c0, s0, run = numeric_runs[-1]
                    numeric_runs[-1] = (c0, s0, run + 1)       # extend run
                else:
                    numeric_runs.append((col, len(num_cols), 1))
                num_cols.append(idx.astype(jnp.float32))
                col += 1
            else:
                tab = self.tables[name]
                dim = tab.shape[-1]
                emb_meta.append((col, dim))
                # clamp (torch would raise on OOB indices; kernels cannot)
                ids_rows.append(jnp.clip(idx.astype(jnp.int32), 0,
                                         tab.shape[0] - 1))
                tables.append(tab)
                col += dim
        total_dim = col

        if not tables:  # all-numeric degenerate case: plain JAX suffices
            return jnp.stack(num_cols, axis=1)

        b_pad = _round_up(batch, 8)
        ids = jnp.stack(ids_rows, axis=0)                       # (n_emb, B)
        numeric_block = (jnp.stack(num_cols, axis=1) if num_cols
                         else jnp.zeros((batch, 1), jnp.float32))
        if b_pad != batch:
            ids = jnp.pad(ids, ((0, 0), (0, b_pad - batch)))
            numeric_block = jnp.pad(numeric_block, ((0, b_pad - batch), (0, 0)))

        out = fused_feature_embedding(ids, numeric_block, tables, emb_meta,
                                      numeric_runs, total_dim)
        return out[:batch, :total_dim]


if __name__ == "__main__":
    B = 16
    feature_map = {
        "is_numeric_bucket": False,
        "features_map": {
            "label": {"vocab_size": 2, "feature_dim": 1},
            "I1": {"vocab_size": 100, "feature_dim": 8},
            "I2": {"vocab_size": 100, "feature_dim": 8},
            "C1": {"vocab_size": 50, "feature_dim": 16},
            "C2": {"vocab_size": 30, "feature_dim": 16},
            "C3": {"vocab_size": 40, "feature_dim": 16},
        },
    }

    root = jax.random.PRNGKey(0)
    k_params, k_data = jax.random.split(root)
    model = CriteoFeatureEmbeddingPallas(feature_map, k_params)

    # deterministic inputs: one (B,) int32 index vector per feature
    X = {}
    for name, conf in feature_map["features_map"].items():
        if name == "label":
            continue
        k_data, sub = jax.random.split(k_data)
        X[name] = jax.random.randint(
            sub, (B,), 0, conf["vocab_size"], dtype=jnp.int32)

    out = model(X)
    out = jax.block_until_ready(out)

    # pure-JAX reference (true gather in the kernel -> exact match)
    ref_parts = []
    for name, idx in X.items():
        if ("I" in name) and (not feature_map["is_numeric_bucket"]):
            ref_parts.append(idx.astype(jnp.float32).reshape(B, 1))
        else:
            ref_parts.append(jnp.take(model.tables[name], idx, axis=0))
    ref = jnp.concatenate(ref_parts, axis=1)

    assert out.shape == (B, 1 + 1 + 16 + 16 + 16), out.shape
    assert out.dtype == jnp.float32
    assert jnp.allclose(out, ref, atol=1e-6), "mismatch vs reference"

    print("KERNEL_OK")
</pallas_src>

<mosaic_0001>
module attributes {stable_mosaic.version = 11 : i64} {
  func.func @kernel(%arg0: i32, %arg1: memref<3x16xi32, #tpu.memory_space<smem>>, %arg2: memref<8x2xf32, #tpu.memory_space<vmem>>, %arg3: memref<50x16xf32, #tpu.memory_space<vmem>>, %arg4: memref<30x16xf32, #tpu.memory_space<vmem>>, %arg5: memref<40x16xf32, #tpu.memory_space<vmem>>, %arg6: memref<8x128xf32, #tpu.memory_space<vmem>>) attributes {dimension_semantics = [#tpu.dimension_semantics<parallel>], iteration_bounds = array<i64: 2>, scalar_prefetch = 1 : i64, scratch_operands = 0 : i64, tpu.core_type = #tpu.core_type<tc>, window_params = [{transform_indices = @transform_0, window_bounds = array<i64: 8, 2>}, {pipeline_mode = #tpu.pipeline_mode<synchronous>, transform_indices = @transform_1, window_bounds = array<i64: 50, 16>}, {pipeline_mode = #tpu.pipeline_mode<synchronous>, transform_indices = @transform_2, window_bounds = array<i64: 30, 16>}, {pipeline_mode = #tpu.pipeline_mode<synchronous>, transform_indices = @transform_3, window_bounds = array<i64: 40, 16>}, {transform_indices = @transform_4, window_bounds = array<i64: 8, 128>}]} {
    %c8_i32 = arith.constant 8 : i32
    %0 = arith.muli %arg0, %c8_i32 : i32
    %1 = tpu.assume_multiple %0, 8 : i32
    %c0 = arith.constant 0 : index
    %c0_0 = arith.constant 0 : index
    %2 = vector.load %arg2[%c0, %c0_0] : memref<8x2xf32, #tpu.memory_space<vmem>>, vector<8x2xf32>
    %c0_1 = arith.constant 0 : index
    %c0_2 = arith.constant 0 : index
    %3 = vector.load %arg6[%c0_1, %c0_2] : memref<8x128xf32, #tpu.memory_space<vmem>>, vector<8x2xf32>
    tpu.vector_store %arg6[%c0_1, %c0_2], %2 {strides = array<i32>} : memref<8x128xf32, #tpu.memory_space<vmem>>, vector<8x2xf32>,
    %c0_i32 = arith.constant 0 : i32
    %4 = arith.addi %1, %c0_i32 : i32
    %c0_3 = arith.constant 0 : index
    %5 = arith.index_cast %4 : i32 to index
    %6 = memref.load %arg1[%c0_3, %5] : memref<3x16xi32, #tpu.memory_space<smem>>
    %7 = arith.index_cast %6 : i32 to index
    %c0_4 = arith.constant 0 : index
    %8 = vector.load %arg3[%7, %c0_4] : memref<50x16xf32, #tpu.memory_space<vmem>>, vector<1x16xf32>
    %9 = arith.index_cast %c0_i32 : i32 to index
    %c2 = arith.constant 2 : index
    %10 = vector.load %arg6[%9, %c2] : memref<8x128xf32, #tpu.memory_space<vmem>>, vector<1x16xf32>
    tpu.vector_store %arg6[%9, %c2], %8 {strides = array<i32>} : memref<8x128xf32, #tpu.memory_space<vmem>>, vector<1x16xf32>,
    %11 = arith.addi %1, %c0_i32 : i32
    %c1 = arith.constant 1 : index
    %12 = arith.index_cast %11 : i32 to index
    %13 = memref.load %arg1[%c1, %12] : memref<3x16xi32, #tpu.memory_space<smem>>
    %14 = arith.index_cast %13 : i32 to index
    %c0_5 = arith.constant 0 : index
    %15 = vector.load %arg4[%14, %c0_5] : memref<30x16xf32, #tpu.memory_space<vmem>>, vector<1x16xf32>
    %16 = arith.index_cast %c0_i32 : i32 to index
    %c18 = arith.constant 18 : index
    %17 = vector.load %arg6[%16, %c18] : memref<8x128xf32, #tpu.memory_space<vmem>>, vector<1x16xf32>
    tpu.vector_store %arg6[%16, %c18], %15 {strides = array<i32>} : memref<8x128xf32, #tpu.memory_space<vmem>>, vector<1x16xf32>,
    %18 = arith.addi %1, %c0_i32 : i32
    %c2_6 = arith.constant 2 : index
    %19 = arith.index_cast %18 : i32 to index
    %20 = memref.load %arg1[%c2_6, %19] : memref<3x16xi32, #tpu.memory_space<smem>>
    %21 = arith.index_cast %20 : i32 to index
    %c0_7 = arith.constant 0 : index
    %22 = vector.load %arg5[%21, %c0_7] : memref<40x16xf32, #tpu.memory_space<vmem>>, vector<1x16xf32>
    %23 = arith.index_cast %c0_i32 : i32 to index
    %c34 = arith.constant 34 : index
    %24 = vector.load %arg6[%23, %c34] : memref<8x128xf32, #tpu.memory_space<vmem>>, vector<1x16xf32>
    tpu.vector_store %arg6[%23, %c34], %22 {strides = array<i32>} : memref<8x128xf32, #tpu.memory_space<vmem>>, vector<1x16xf32>,
    %c1_i32 = arith.constant 1 : i32
    %25 = arith.addi %1, %c1_i32 : i32
    %c0_8 = arith.constant 0 : index
    %26 = arith.index_cast %25 : i32 to index
    %27 = memref.load %arg1[%c0_8, %26] : memref<3x16xi32, #tpu.memory_space<smem>>
    %28 = arith.index_cast %27 : i32 to index
    %c0_9 = arith.constant 0 : index
    %29 = vector.load %arg3[%28, %c0_9] : memref<50x16xf32, #tpu.memory_space<vmem>>, vector<1x16xf32>
    %30 = arith.index_cast %c1_i32 : i32 to index
    %c2_10 = arith.constant 2 : index
    %31 = vector.load %arg6[%30, %c2_10] : memref<8x128xf32, #tpu.memory_space<vmem>>, vector<1x16xf32>
    tpu.vector_store %arg6[%30, %c2_10], %29 {strides = array<i32>} : memref<8x128xf32, #tpu.memory_space<vmem>>, vector<1x16xf32>,
    %32 = arith.addi %1, %c1_i32 : i32
    %c1_11 = arith.constant 1 : index
    %33 = arith.index_cast %32 : i32 to index
    %34 = memref.load %arg1[%c1_11, %33] : memref<3x16xi32, #tpu.memory_space<smem>>
    %35 = arith.index_cast %34 : i32 to index
    %c0_12 = arith.constant 0 : index
    %36 = vector.load %arg4[%35, %c0_12] : memref<30x16xf32, #tpu.memory_space<vmem>>, vector<1x16xf32>
    %37 = arith.index_cast %c1_i32 : i32 to index
    %c18_13 = arith.constant 18 : index
    %38 = vector.load %arg6[%37, %c18_13] : memref<8x128xf32, #tpu.memory_space<vmem>>, vector<1x16xf32>
    tpu.vector_store %arg6[%37, %c18_13], %36 {strides = array<i32>} : memref<8x128xf32, #tpu.memory_space<vmem>>, vector<1x16xf32>,
    %39 = arith.addi %1, %c1_i32 : i32
    %c2_14 = arith.constant 2 : index
    %40 = arith.index_cast %39 : i32 to index
    %41 = memref.load %arg1[%c2_14, %40] : memref<3x16xi32, #tpu.memory_space<smem>>
    %42 = arith.index_cast %41 : i32 to index
    %c0_15 = arith.constant 0 : index
    %43 = vector.load %arg5[%42, %c0_15] : memref<40x16xf32, #tpu.memory_space<vmem>>, vector<1x16xf32>
    %44 = arith.index_cast %c1_i32 : i32 to index
    %c34_16 = arith.constant 34 : index
    %45 = vector.load %arg6[%44, %c34_16] : memref<8x128xf32, #tpu.memory_space<vmem>>, vector<1x16xf32>
    tpu.vector_store %arg6[%44, %c34_16], %43 {strides = array<i32>} : memref<8x128xf32, #tpu.memory_space<vmem>>, vector<1x16xf32>,
    %c2_i32 = arith.constant 2 : i32
    %46 = arith.addi %1, %c2_i32 : i32
    %c0_17 = arith.constant 0 : index
    %47 = arith.index_cast %46 : i32 to index
    %48 = memref.load %arg1[%c0_17, %47] : memref<3x16xi32, #tpu.memory_space<smem>>
    %49 = arith.index_cast %48 : i32 to index
    %c0_18 = arith.constant 0 : index
    %50 = vector.load %arg3[%49, %c0_18] : memref<50x16xf32, #tpu.memory_space<vmem>>, vector<1x16xf32>
    %51 = arith.index_cast %c2_i32 : i32 to index
    %c2_19 = arith.constant 2 : index
    %52 = vector.load %arg6[%51, %c2_19] : memref<8x128xf32, #tpu.memory_space<vmem>>, vector<1x16xf32>
    tpu.vector_store %arg6[%51, %c2_19], %50 {strides = array<i32>} : memref<8x128xf32, #tpu.memory_space<vmem>>, vector<1x16xf32>,
    %53 = arith.addi %1, %c2_i32 : i32
    %c1_20 = arith.constant 1 : index
    %54 = arith.index_cast %53 : i32 to index
    %55 = memref.load %arg1[%c1_20, %54] : memref<3x16xi32, #tpu.memory_space<smem>>
    %56 = arith.index_cast %55 : i32 to index
    %c0_21 = arith.constant 0 : index
    %57 = vector.load %arg4[%56, %c0_21] : memref<30x16xf32, #tpu.memory_space<vmem>>, vector<1x16xf32>
    %58 = arith.index_cast %c2_i32 : i32 to index
    %c18_22 = arith.constant 18 : index
    %59 = vector.load %arg6[%58, %c18_22] : memref<8x128xf32, #tpu.memory_space<vmem>>, vector<1x16xf32>
    tpu.vector_store %arg6[%58, %c18_22], %57 {strides = array<i32>} : memref<8x128xf32, #tpu.memory_space<vmem>>, vector<1x16xf32>,
    %60 = arith.addi %1, %c2_i32 : i32
    %c2_23 = arith.constant 2 : index
    %61 = arith.index_cast %60 : i32 to index
    %62 = memref.load %arg1[%c2_23, %61] : memref<3x16xi32, #tpu.memory_space<smem>>
    %63 = arith.index_cast %62 : i32 to index
    %c0_24 = arith.constant 0 : index
    %64 = vector.load %arg5[%63, %c0_24] : memref<40x16xf32, #tpu.memory_space<vmem>>, vector<1x16xf32>
    %65 = arith.index_cast %c2_i32 : i32 to index
    %c34_25 = arith.constant 34 : index
    %66 = vector.load %arg6[%65, %c34_25] : memref<8x128xf32, #tpu.memory_space<vmem>>, vector<1x16xf32>
    tpu.vector_store %arg6[%65, %c34_25], %64 {strides = array<i32>} : memref<8x128xf32, #tpu.memory_space<vmem>>, vector<1x16xf32>,
    %c3_i32 = arith.constant 3 : i32
    %67 = arith.addi %1, %c3_i32 : i32
    %c0_26 = arith.constant 0 : index
    %68 = arith.index_cast %67 : i32 to index
    %69 = memref.load %arg1[%c0_26, %68] : memref<3x16xi32, #tpu.memory_space<smem>>
    %70 = arith.index_cast %69 : i32 to index
    %c0_27 = arith.constant 0 : index
    %71 = vector.load %arg3[%70, %c0_27] : memref<50x16xf32, #tpu.memory_space<vmem>>, vector<1x16xf32>
    %72 = arith.index_cast %c3_i32 : i32 to index
    %c2_28 = arith.constant 2 : index
    %73 = vector.load %arg6[%72, %c2_28] : memref<8x128xf32, #tpu.memory_space<vmem>>, vector<1x16xf32>
    tpu.vector_store %arg6[%72, %c2_28], %71 {strides = array<i32>} : memref<8x128xf32, #tpu.memory_space<vmem>>, vector<1x16xf32>,
    %74 = arith.addi %1, %c3_i32 : i32
    %c1_29 = arith.constant 1 : index
    %75 = arith.index_cast %74 : i32 to index
    %76 = memref.load %arg1[%c1_29, %75] : memref<3x16xi32, #tpu.memory_space<smem>>
    %77 = arith.index_cast %76 : i32 to index
    %c0_30 = arith.constant 0 : index
    %78 = vector.load %arg4[%77, %c0_30] : memref<30x16xf32, #tpu.memory_space<vmem>>, vector<1x16xf32>
    %79 = arith.index_cast %c3_i32 : i32 to index
    %c18_31 = arith.constant 18 : index
    %80 = vector.load %arg6[%79, %c18_31] : memref<8x128xf32, #tpu.memory_space<vmem>>, vector<1x16xf32>
    tpu.vector_store %arg6[%79, %c18_31], %78 {strides = array<i32>} : memref<8x128xf32, #tpu.memory_space<vmem>>, vector<1x16xf32>,
    %81 = arith.addi %1, %c3_i32 : i32
    %c2_32 = arith.constant 2 : index
    %82 = arith.index_cast %81 : i32 to index
    %83 = memref.load %arg1[%c2_32, %82] : memref<3x16xi32, #tpu.memory_space<smem>>
    %84 = arith.index_cast %83 : i32 to index
    %c0_33 = arith.constant 0 : index
    %85 = vector.load %arg5[%84, %c0_33] : memref<40x16xf32, #tpu.memory_space<vmem>>, vector<1x16xf32>
    %86 = arith.index_cast %c3_i32 : i32 to index
    %c34_34 = arith.constant 34 : index
    %87 = vector.load %arg6[%86, %c34_34] : memref<8x128xf32, #tpu.memory_space<vmem>>, vector<1x16xf32>
    tpu.vector_store %arg6[%86, %c34_34], %85 {strides = array<i32>} : memref<8x128xf32, #tpu.memory_space<vmem>>, vector<1x16xf32>,
    %c4_i32 = arith.constant 4 : i32
    %88 = arith.addi %1, %c4_i32 : i32
    %c0_35 = arith.constant 0 : index
    %89 = arith.index_cast %88 : i32 to index
    %90 = memref.load %arg1[%c0_35, %89] : memref<3x16xi32, #tpu.memory_space<smem>>
    %91 = arith.index_cast %90 : i32 to index
    %c0_36 = arith.constant 0 : index
    %92 = vector.load %arg3[%91, %c0_36] : memref<50x16xf32, #tpu.memory_space<vmem>>, vector<1x16xf32>
    %93 = arith.index_cast %c4_i32 : i32 to index
    %c2_37 = arith.constant 2 : index
    %94 = vector.load %arg6[%93, %c2_37] : memref<8x128xf32, #tpu.memory_space<vmem>>, vector<1x16xf32>
    tpu.vector_store %arg6[%93, %c2_37], %92 {strides = array<i32>} : memref<8x128xf32, #tpu.memory_space<vmem>>, vector<1x16xf32>,
    %95 = arith.addi %1, %c4_i32 : i32
    %c1_38 = arith.constant 1 : index
    %96 = arith.index_cast %95 : i32 to index
    %97 = memref.load %arg1[%c1_38, %96] : memref<3x16xi32, #tpu.memory_space<smem>>
    %98 = arith.index_cast %97 : i32 to index
    %c0_39 = arith.constant 0 : index
    %99 = vector.load %arg4[%98, %c0_39] : memref<30x16xf32, #tpu.memory_space<vmem>>, vector<1x16xf32>
    %100 = arith.index_cast %c4_i32 : i32 to index
    %c18_40 = arith.constant 18 : index
    %101 = vector.load %arg6[%100, %c18_40] : memref<8x128xf32, #tpu.memory_space<vmem>>, vector<1x16xf32>
    tpu.vector_store %arg6[%100, %c18_40], %99 {strides = array<i32>} : memref<8x128xf32, #tpu.memory_space<vmem>>, vector<1x16xf32>,
    %102 = arith.addi %1, %c4_i32 : i32
    %c2_41 = arith.constant 2 : index
    %103 = arith.index_cast %102 : i32 to index
    %104 = memref.load %arg1[%c2_41, %103] : memref<3x16xi32, #tpu.memory_space<smem>>
    %105 = arith.index_cast %104 : i32 to index
    %c0_42 = arith.constant 0 : index
    %106 = vector.load %arg5[%105, %c0_42] : memref<40x16xf32, #tpu.memory_space<vmem>>, vector<1x16xf32>
    %107 = arith.index_cast %c4_i32 : i32 to index
    %c34_43 = arith.constant 34 : index
    %108 = vector.load %arg6[%107, %c34_43] : memref<8x128xf32, #tpu.memory_space<vmem>>, vector<1x16xf32>
    tpu.vector_store %arg6[%107, %c34_43], %106 {strides = array<i32>} : memref<8x128xf32, #tpu.memory_space<vmem>>, vector<1x16xf32>,
    %c5_i32 = arith.constant 5 : i32
    %109 = arith.addi %1, %c5_i32 : i32
    %c0_44 = arith.constant 0 : index
    %110 = arith.index_cast %109 : i32 to index
    %111 = memref.load %arg1[%c0_44, %110] : memref<3x16xi32, #tpu.memory_space<smem>>
    %112 = arith.index_cast %111 : i32 to index
    %c0_45 = arith.constant 0 : index
    %113 = vector.load %arg3[%112, %c0_45] : memref<50x16xf32, #tpu.memory_space<vmem>>, vector<1x16xf32>
    %114 = arith.index_cast %c5_i32 : i32 to index
    %c2_46 = arith.constant 2 : index
    %115 = vector.load %arg6[%114, %c2_46] : memref<8x128xf32, #tpu.memory_space<vmem>>, vector<1x16xf32>
    tpu.vector_store %arg6[%114, %c2_46], %113 {strides = array<i32>} : memref<8x128xf32, #tpu.memory_space<vmem>>, vector<1x16xf32>,
    %116 = arith.addi %1, %c5_i32 : i32
    %c1_47 = arith.constant 1 : index
    %117 = arith.index_cast %116 : i32 to index
    %118 = memref.load %arg1[%c1_47, %117] : memref<3x16xi32, #tpu.memory_space<smem>>
    %119 = arith.index_cast %118 : i32 to index
    %c0_48 = arith.constant 0 : index
    %120 = vector.load %arg4[%119, %c0_48] : memref<30x16xf32, #tpu.memory_space<vmem>>, vector<1x16xf32>
    %121 = arith.index_cast %c5_i32 : i32 to index
    %c18_49 = arith.constant 18 : index
    %122 = vector.load %arg6[%121, %c18_49] : memref<8x128xf32, #tpu.memory_space<vmem>>, vector<1x16xf32>
    tpu.vector_store %arg6[%121, %c18_49], %120 {strides = array<i32>} : memref<8x128xf32, #tpu.memory_space<vmem>>, vector<1x16xf32>,
    %123 = arith.addi %1, %c5_i32 : i32
    %c2_50 = arith.constant 2 : index
    %124 = arith.index_cast %123 : i32 to index
    %125 = memref.load %arg1[%c2_50, %124] : memref<3x16xi32, #tpu.memory_space<smem>>
    %126 = arith.index_cast %125 : i32 to index
    %c0_51 = arith.constant 0 : index
    %127 = vector.load %arg5[%126, %c0_51] : memref<40x16xf32, #tpu.memory_space<vmem>>, vector<1x16xf32>
    %128 = arith.index_cast %c5_i32 : i32 to index
    %c34_52 = arith.constant 34 : index
    %129 = vector.load %arg6[%128, %c34_52] : memref<8x128xf32, #tpu.memory_space<vmem>>, vector<1x16xf32>
    tpu.vector_store %arg6[%128, %c34_52], %127 {strides = array<i32>} : memref<8x128xf32, #tpu.memory_space<vmem>>, vector<1x16xf32>,
    %c6_i32 = arith.constant 6 : i32
    %130 = arith.addi %1, %c6_i32 : i32
    %c0_53 = arith.constant 0 : index
    %131 = arith.index_cast %130 : i32 to index
    %132 = memref.load %arg1[%c0_53, %131] : memref<3x16xi32, #tpu.memory_space<smem>>
    %133 = arith.index_cast %132 : i32 to index
    %c0_54 = arith.constant 0 : index
    %134 = vector.load %arg3[%133, %c0_54] : memref<50x16xf32, #tpu.memory_space<vmem>>, vector<1x16xf32>
    %135 = arith.index_cast %c6_i32 : i32 to index
    %c2_55 = arith.constant 2 : index
    %136 = vector.load %arg6[%135, %c2_55] : memref<8x128xf32, #tpu.memory_space<vmem>>, vector<1x16xf32>
    tpu.vector_store %arg6[%135, %c2_55], %134 {strides = array<i32>} : memref<8x128xf32, #tpu.memory_space<vmem>>, vector<1x16xf32>,
    %137 = arith.addi %1, %c6_i32 : i32
    %c1_56 = arith.constant 1 : index
    %138 = arith.index_cast %137 : i32 to index
    %139 = memref.load %arg1[%c1_56, %138] : memref<3x16xi32, #tpu.memory_space<smem>>
    %140 = arith.index_cast %139 : i32 to index
    %c0_57 = arith.constant 0 : index
    %141 = vector.load %arg4[%140, %c0_57] : memref<30x16xf32, #tpu.memory_space<vmem>>, vector<1x16xf32>
    %142 = arith.index_cast %c6_i32 : i32 to index
    %c18_58 = arith.constant 18 : index
    %143 = vector.load %arg6[%142, %c18_58] : memref<8x128xf32, #tpu.memory_space<vmem>>, vector<1x16xf32>
    tpu.vector_store %arg6[%142, %c18_58], %141 {strides = array<i32>} : memref<8x128xf32, #tpu.memory_space<vmem>>, vector<1x16xf32>,
    %144 = arith.addi %1, %c6_i32 : i32
    %c2_59 = arith.constant 2 : index
    %145 = arith.index_cast %144 : i32 to index
    %146 = memref.load %arg1[%c2_59, %145] : memref<3x16xi32, #tpu.memory_space<smem>>
    %147 = arith.index_cast %146 : i32 to index
    %c0_60 = arith.constant 0 : index
    %148 = vector.load %arg5[%147, %c0_60] : memref<40x16xf32, #tpu.memory_space<vmem>>, vector<1x16xf32>
    %149 = arith.index_cast %c6_i32 : i32 to index
    %c34_61 = arith.constant 34 : index
    %150 = vector.load %arg6[%149, %c34_61] : memref<8x128xf32, #tpu.memory_space<vmem>>, vector<1x16xf32>
    tpu.vector_store %arg6[%149, %c34_61], %148 {strides = array<i32>} : memref<8x128xf32, #tpu.memory_space<vmem>>, vector<1x16xf32>,
    %c7_i32 = arith.constant 7 : i32
    %151 = arith.addi %1, %c7_i32 : i32
    %c0_62 = arith.constant 0 : index
    %152 = arith.index_cast %151 : i32 to index
    %153 = memref.load %arg1[%c0_62, %152] : memref<3x16xi32, #tpu.memory_space<smem>>
    %154 = arith.index_cast %153 : i32 to index
    %c0_63 = arith.constant 0 : index
    %155 = vector.load %arg3[%154, %c0_63] : memref<50x16xf32, #tpu.memory_space<vmem>>, vector<1x16xf32>
    %156 = arith.index_cast %c7_i32 : i32 to index
    %c2_64 = arith.constant 2 : index
    %157 = vector.load %arg6[%156, %c2_64] : memref<8x128xf32, #tpu.memory_space<vmem>>, vector<1x16xf32>
    tpu.vector_store %arg6[%156, %c2_64], %155 {strides = array<i32>} : memref<8x128xf32, #tpu.memory_space<vmem>>, vector<1x16xf32>,
    %158 = arith.addi %1, %c7_i32 : i32
    %c1_65 = arith.constant 1 : index
    %159 = arith.index_cast %158 : i32 to index
    %160 = memref.load %arg1[%c1_65, %159] : memref<3x16xi32, #tpu.memory_space<smem>>
    %161 = arith.index_cast %160 : i32 to index
    %c0_66 = arith.constant 0 : index
    %162 = vector.load %arg4[%161, %c0_66] : memref<30x16xf32, #tpu.memory_space<vmem>>, vector<1x16xf32>
    %163 = arith.index_cast %c7_i32 : i32 to index
    %c18_67 = arith.constant 18 : index
    %164 = vector.load %arg6[%163, %c18_67] : memref<8x128xf32, #tpu.memory_space<vmem>>, vector<1x16xf32>
    tpu.vector_store %arg6[%163, %c18_67], %162 {strides = array<i32>} : memref<8x128xf32, #tpu.memory_space<vmem>>, vector<1x16xf32>,
    %165 = arith.addi %1, %c7_i32 : i32
    %c2_68 = arith.constant 2 : index
    %166 = arith.index_cast %165 : i32 to index
    %167 = memref.load %arg1[%c2_68, %166] : memref<3x16xi32, #tpu.memory_space<smem>>
    %168 = arith.index_cast %167 : i32 to index
    %c0_69 = arith.constant 0 : index
    %169 = vector.load %arg5[%168, %c0_69] : memref<40x16xf32, #tpu.memory_space<vmem>>, vector<1x16xf32>
    %170 = arith.index_cast %c7_i32 : i32 to index
    %c34_70 = arith.constant 34 : index
    %171 = vector.load %arg6[%170, %c34_70] : memref<8x128xf32, #tpu.memory_space<vmem>>, vector<1x16xf32>
    tpu.vector_store %arg6[%170, %c34_70], %169 {strides = array<i32>} : memref<8x128xf32, #tpu.memory_space<vmem>>, vector<1x16xf32>,
    %c8_i32_71 = arith.constant 8 : i32
    return
  }
  func.func @transform_0(%arg0: i32, %arg1: memref<3x16xi32, #tpu.memory_space<smem>>) -> (i32, i32) {
    %c0_i32 = arith.constant 0 : i32
    %c0_i32_0 = arith.constant 0 : i32
    return %arg0, %c0_i32 : i32, i32
  }
  func.func @transform_1(%arg0: i32, %arg1: memref<3x16xi32, #tpu.memory_space<smem>>) -> (i32, i32) {
    %c0_i32 = arith.constant 0 : i32
    %c0_i32_0 = arith.constant 0 : i32
    %c0_i32_1 = arith.constant 0 : i32
    return %c0_i32, %c0_i32_0 : i32, i32
  }
  func.func @transform_2(%arg0: i32, %arg1: memref<3x16xi32, #tpu.memory_space<smem>>) -> (i32, i32) {
    %c0_i32 = arith.constant 0 : i32
    %c0_i32_0 = arith.constant 0 : i32
    %c0_i32_1 = arith.constant 0 : i32
    return %c0_i32, %c0_i32_0 : i32, i32
  }
  func.func @transform_3(%arg0: i32, %arg1: memref<3x16xi32, #tpu.memory_space<smem>>) -> (i32, i32) {
    %c0_i32 = arith.constant 0 : i32
    %c0_i32_0 = arith.constant 0 : i32
    %c0_i32_1 = arith.constant 0 : i32
    return %c0_i32, %c0_i32_0 : i32, i32
  }
  func.func @transform_4(%arg0: i32, %arg1: memref<3x16xi32, #tpu.memory_space<smem>>) -> (i32, i32) {
    %c0_i32 = arith.constant 0 : i32
    %c0_i32_0 = arith.constant 0 : i32
    return %arg0, %c0_i32 : i32, i32
  }
}

</mosaic_0001>

<llo_original>
// kernel: tpu_custom_call.1
$region0: #{tpu_custom_call.1}
  #allocation0 [shape = 'u32[]', space=smem, size = 0x4, offset = 0x4, fixed_abs, tag = 'smem constant byte address 0x4 - core index']
  #allocation1 [shape = 'u32[72,128]{1,0:T(1,128)}', space=vmem, size = 0x9000, scoped, tag = 'internal scratch']
  #allocation2 [shape = 's32[1]{0}', space=sflag, size = 0x4, scoped, tag = 'scoped memory for tpu_custom_call.1']
  #allocation3 [shape = 'u8[2048]{0}', space=smem, size = 0x800, scoped, tag = 'prefetched SMEM operand 0']
  %s0 = inlined_call_operand.vmem [shape: s32[3,16], index: 0, kind: input, shape index: {}]
  %s1 = inlined_call_operand.vmem [shape: f32[16,2], index: 1, kind: input, shape index: {}]
  %s2 = inlined_call_operand.vmem [shape: f32[50,16], index: 2, kind: input, shape index: {}]
  %s3 = inlined_call_operand.vmem [shape: f32[30,16], index: 3, kind: input, shape index: {}]
  %s4 = inlined_call_operand.vmem [shape: f32[40,16], index: 4, kind: input, shape index: {}]
  %s5 = inlined_call_operand.hbm [shape: f32[16,128], index: 5, kind: output, shape index: {}]
  %s6 = sld [smem:[#allocation0]]
  $region49: #{tpu_custom_call.1} parent=0
    _
  %s8 = ssub.s32 1, %s6
  %s9 = scalar_select 0, %s8, %s6
  %s11 = sshll.u32 %s0, 4
  %s12 = int_to_ptr.vmem [resolvable:$true] %s11
  %14 = dma.vmem_to_smem %s12, 64, [#allocation3], [#allocation2]
  %16 = dma.done [#allocation2], 64
  %17 = sfence
  $region1: #{tpu_custom_call.1} parent=0
    #allocation4 [shape = 'u8[8192]{0}', space=vmem, size = 0x2000, scoped, tag = 'output window, operand 0']
    #allocation5 [shape = 's32[2]{0}', space=sflag, size = 0x8, scoped, tag = 'scoped memory for tpu_custom_call.1']
    %18 = vsyncpa [#allocation5], 0
    %s19 = scalar_lea.sflag [#allocation5], 1
    %20 = vsyncpa %s19, 0
    loop: start=0, step=1, limit=4
    $region2: #{tpu_custom_call.1} parent=1 // loop_pre_header
      _
    $region3: #{tpu_custom_call.1} parent=1 // loop_header
      %s22 = sphi 0, %s26
      %p23 = scmp.ge.s32.totalorder %s22, 4
      %s32 = sphi 0, %s34
      %s35 = sphi 0, %s32
      %s36 = sphi 0, %s35
      %s52 = sphi 0, %s36
      %s56 = sphi 0, %s56
      %s58 = sphi 0, %s56
      %s59 = sphi 0, %s58
      %s73 = sphi 0, %s59
      %s77 = sphi 0, %s77
      %s79 = sphi 0, %s77
      %s80 = sphi 0, %s79
      %s94 = sphi 0, %s80
      %s98 = sphi 0, %s98
      %s100 = sphi 0, %s98
      %s101 = sphi 0, %s100
      %s115 = sphi 0, %s101
      %s121 = sphi 0, %s123
      %s124 = sphi 0, %s121
      %s125 = sphi 0, %s124
      %s141 = sphi 0, %s125
    $region4: #{tpu_custom_call.1} parent=1 // loop_header_branch
      %25 = sbr.rel (%p23) target = $region8
    $region5: #{tpu_custom_call.1} parent=1 // loop_body
      %s27 = ssub.s32 %s22, 1
      %s28 = ssub.s32 %s22, 2
      %s29 = sadd.s32 %s22, 1
      %s30 = ssub.s32 %s22, %s29
      %p31 = scmp.eq.s32.totalorder %s30, 0
      %s33 = sadd.s32 %s32, 1
      %s34 = scalar_select %p31, %s32, %s33
      %p37 = pneg %p31
      %p38 = scmp.eq.s32.totalorder %s22, 1
      %p39 = por %p37, %p38
      %p40 = scmp.ne.s32.totalorder %s32, %s35
      %p41 = scmp.eq.s32.totalorder %s22, 0
      %p42 = por %p40, %p41
      %p43 = scmp.ne.s32.totalorder %s32, %s35
      %p44 = scmp.eq.s32.totalorder %s27, 1
      %p45 = por %p43, %p44
      %p46 = scmp.ne.s32.totalorder %s35, %s36
      %p47 = scmp.eq.s32.totalorder %s27, 0
      %p48 = por %p46, %p47
      %p49 = scmp.ne.s32.totalorder %s35, %s36
      %p50 = scmp.eq.s32.totalorder %s28, 1
      %p51 = por %p49, %p50
      %p53 = scmp.ne.s32.totalorder %s36, %s52
      %p54 = scmp.eq.s32.totalorder %s28, 0
      %p55 = por %p53, %p54
      %s57 = sadd.s32 %s56, 1
      %p60 = scmp.eq.s32.totalorder %s22, 1
      %p61 = scmp.ne.s32.totalorder %s56, %s58
      %p62 = scmp.eq.s32.totalorder %s22, 0
      %p63 = por %p61, %p62
      %p64 = scmp.ne.s32.totalorder %s56, %s58
      %p65 = scmp.eq.s32.totalorder %s27, 1
      %p66 = por %p64, %p65
      %p67 = scmp.ne.s32.totalorder %s58, %s59
      %p68 = scmp.eq.s32.totalorder %s27, 0
      %p69 = por %p67, %p68
      %p70 = scmp.ne.s32.totalorder %s58, %s59
      %p71 = scmp.eq.s32.totalorder %s28, 1
      %p72 = por %p70, %p71
      %p74 = scmp.ne.s32.totalorder %s59, %s73
      %p75 = scmp.eq.s32.totalorder %s28, 0
      %p76 = por %p74, %p75
      %s78 = sadd.s32 %s77, 1
      %p81 = scmp.eq.s32.totalorder %s22, 1
      %p82 = scmp.ne.s32.totalorder %s77, %s79
      %p83 = scmp.eq.s32.totalorder %s22, 0
      %p84 = por %p82, %p83
      %p85 = scmp.ne.s32.totalorder %s77, %s79
      %p86 = scmp.eq.s32.totalorder %s27, 1
      %p87 = por %p85, %p86
      %p88 = scmp.ne.s32.totalorder %s79, %s80
      %p89 = scmp.eq.s32.totalorder %s27, 0
      %p90 = por %p88, %p89
      %p91 = scmp.ne.s32.totalorder %s79, %s80
      %p92 = scmp.eq.s32.totalorder %s28, 1
      %p93 = por %p91, %p92
      %p95 = scmp.ne.s32.totalorder %s80, %s94
      %p96 = scmp.eq.s32.totalorder %s28, 0
      %p97 = por %p95, %p96
      %s99 = sadd.s32 %s98, 1
      %p102 = scmp.eq.s32.totalorder %s22, 1
      %p103 = scmp.ne.s32.totalorder %s98, %s100
      %p104 = scmp.eq.s32.totalorder %s22, 0
      %p105 = por %p103, %p104
      %p106 = scmp.ne.s32.totalorder %s98, %s100
      %p107 = scmp.eq.s32.totalorder %s27, 1
      %p108 = por %p106, %p107
      %p109 = scmp.ne.s32.totalorder %s100, %s101
      %p110 = scmp.eq.s32.totalorder %s27, 0
      %p111 = por %p109, %p110
      %p112 = scmp.ne.s32.totalorder %s100, %s101
      %p113 = scmp.eq.s32.totalorder %s28, 1
      %p114 = por %p112, %p113
      %p116 = scmp.ne.s32.totalorder %s101, %s115
      %p117 = scmp.eq.s32.totalorder %s28, 0
      %p118 = por %p116, %p117
      %s119 = ssub.s32 %s22, %s29
      %p120 = scmp.eq.s32.totalorder %s119, 0
      %s122 = sadd.s32 %s121, 1
      %s123 = scalar_select %p120, %s121, %s122
      %p126 = pneg %p120
      %p127 = scmp.eq.s32.totalorder %s22, 1
      %p128 = por %p126, %p127
      %p129 = scmp.ne.s32.totalorder %s121, %s124
      %p130 = scmp.eq.s32.totalorder %s22, 0
      %p131 = por %p129, %p130
      %p132 = scmp.ne.s32.totalorder %s121, %s124
      %p133 = scmp.eq.s32.totalorder %s27, 1
      %p134 = por %p132, %p133
      %p135 = scmp.ne.s32.totalorder %s124, %s125
      %p136 = scmp.eq.s32.totalorder %s27, 0
      %p137 = por %p135, %p136
      %p138 = scmp.ne.s32.totalorder %s124, %s125
      %p139 = scmp.eq.s32.totalorder %s28, 1
      %p140 = por %p138, %p139
      %p142 = scmp.ne.s32.totalorder %s125, %s141
      %p143 = scmp.eq.s32.totalorder %s28, 0
      %p144 = por %p142, %p143
      %p145 = scmp.le.s32.totalorder 1, %s22
      %p146 = scmp.lt.s32.totalorder %s22, 3
      %p147 = pnand %p145, %p146
      %p148 = pneg %p147
      // Predicated region
      $region9: #{tpu_custom_call.1} parent=5 // pred_check
        _
      $region10: #{tpu_custom_call.1} parent=5 // pred_check_branch
        %150 = sbr.rel (%p147) target = $region12
      $region11: #{tpu_custom_call.1} parent=5 // pred_region
        %s151 = ssub.s32 %s22, 1
        // Predicated region
        $region13: #{tpu_custom_call.1} parent=11 // pred_check
          %p152 = pneg %p69
        $region14: #{tpu_custom_call.1} parent=11 // pred_check_branch
          %154 = sbr.rel (%p152) target = $region16
        $region15: #{tpu_custom_call.1} parent=11 // pred_region
          _
        $region16: #{tpu_custom_call.1} parent=11 // pred_fallthru
          _
        // Predicated region
        $region17: #{tpu_custom_call.1} parent=11 // pred_check
          %p155 = pneg %p90
        $region18: #{tpu_custom_call.1} parent=11 // pred_check_branch
          %157 = sbr.rel (%p155) target = $region20
        $region19: #{tpu_custom_call.1} parent=11 // pred_region
          _
        $region20: #{tpu_custom_call.1} parent=11 // pred_fallthru
          _
        // Predicated region
        $region21: #{tpu_custom_call.1} parent=11 // pred_check
          %p158 = pneg %p111
        $region22: #{tpu_custom_call.1} parent=11 // pred_check_branch
          %160 = sbr.rel (%p158) target = $region24
        $region23: #{tpu_custom_call.1} parent=11 // pred_region
          _
        $region24: #{tpu_custom_call.1} parent=11 // pred_fallthru
          _
      $region12: #{tpu_custom_call.1} parent=5 // pred_fallthru
        _
      %p161 = scmp.lt.s32.totalorder %s22, 2
      // Predicated region
      $region25: #{tpu_custom_call.1} parent=5 // pred_check
        %p162 = pneg %p161
      $region26: #{tpu_custom_call.1} parent=5 // pred_check_branch
        %164 = sbr.rel (%p162) target = $region28
      $region27: #{tpu_custom_call.1} parent=5 // pred_region
        // Predicated region
        $region29: #{tpu_custom_call.1} parent=27 // pred_check
          %p165 = pneg %p42
        $region30: #{tpu_custom_call.1} parent=27 // pred_check_branch
          %167 = sbr.rel (%p165) target = $region32
        $region31: #{tpu_custom_call.1} parent=27 // pred_region
          %p168 = scmp.lt.s32.totalorder %s22, 1
          %s169 = scalar_select %p168, %s22, 1
          %s170 = smul.addr %s169, 8
          %s171 = scalar_lea.vmem %s1, %s170
        $region32: #{tpu_custom_call.1} parent=27 // pred_fallthru
          _
      $region28: #{tpu_custom_call.1} parent=5 // pred_fallthru
        _
      %p172 = scmp.le.s32.totalorder 1, %s22
      %p173 = scmp.lt.s32.totalorder %s22, 3
      %p174 = pnand %p172, %p173
      %p175 = pneg %p174
      // Predicated region
      $region33: #{tpu_custom_call.1} parent=5 // pred_check
        _
      $region34: #{tpu_custom_call.1} parent=5 // pred_check_branch
        %177 = sbr.rel (%p174) target = $region36
      $region35: #{tpu_custom_call.1} parent=5 // pred_region
        %s178 = ssub.s32 %s22, 1
        %p179 = scmp.lt.s32.totalorder %s27, 1
        %s180 = scalar_select %p179, %s27, 1
        %s181 = smul.addr %s180, 8
        %s182 = scalar_lea.vmem %s1, %s181
        %p183 = pneg %p48
        %p184 = pneg %p45
        %p185 = pneg %p69
        %p186 = pneg %p66
        %p187 = pneg %p90
        %p188 = pneg %p87
        %p189 = pneg %p111
        %p190 = pneg %p108
        %p191 = pneg %p137
        %p192 = pneg %p134
        %s193 = sand.u32 %s124, 1
        %s194 = scalar_lea.sflag [#allocation5], %s193
        %s195 = sand.u32 %s124, 1
        %s196 = smul.addr %s195, 8
        %s197 = scalar_lea.vmem [#allocation4], %s196
        %p198 = scmp.lt.s32.totalorder %s27, 1
        %s199 = scalar_select %p198, %s27, 1
        %s200 = smul.addr %s199, 8
        %s201 = scalar_lea.vmem %s1, %s200
        %s202 = smul.u32 %s27, 8
        %v203 = vld [vmem:[%s201] sm:$0xff]
        %vm204 = vcmask 15360
        %205 = vst.msk [vmem:[%s197] sm:$0xff] %vm204, %v203
        %s206 = sld [smem:[#allocation3 + %s202]]
        %s207 = scalar_lea.vmem %s2, %s206
        %v208 = vld [vmem:[%s207] sm:$0x1]
        %210 = vrot.lane.b32.xlu0 %v208, 2
        %v211 = vpop.permute.xlu0 %210
        %vm213 = vcmask 139280
        %214 = vst.msk [vmem:[%s197] sm:$0x1] %vm213, %v211
        %s215 = sshra.s32 %s202, 7
        %s216 = sand.u32 %s202, 127
        %s217 = sadd.s32 %s215, 1
        %s218 = smul.u32 %s217, 128
        %s219 = sshra.s32 %s202, 7
        %s220 = sand.u32 %s202, 127
        %s221 = sadd.s32 %s218, %s220
        %s222 = sld [smem:[#allocation3 + %s221]]
        %s223 = scalar_lea.vmem %s3, %s222
        %v224 = vld [vmem:[%s223] sm:$0x1]
        %226 = vrot.lane.b32.xlu0 %v224, 18
        %v227 = vpop.permute.xlu0 %226
        %vm229 = vcmask 270480
        %230 = vst.msk [vmem:[%s197] sm:$0x1] %vm229, %v227
        %s231 = sadd.s32 %s215, 2
        %s232 = smul.u32 %s231, 128
        %s233 = sadd.s32 %s232, %s220
        %s234 = sld [smem:[#allocation3 + %s233]]
        %s235 = scalar_lea.vmem %s4, %s234
        %v236 = vld [vmem:[%s235] sm:$0x1]
        %238 = vrot.lane.b32.xlu0 %v236, 34
        %v239 = vpop.permute.xlu0 %238
        %vm241 = vcmask 401680
        %242 = vst.msk [vmem:[%s197] sm:$0x1] %vm241, %v239
        %s243 = sadd.s32 %s202, 1
        %s244 = sld [smem:[#allocation3 + %s243]]
        %s245 = scalar_lea.vmem %s2, %s244
        %v246 = vld [vmem:[%s245] sm:$0x1]
        %248 = vrot.lane.b32.xlu0 %v246, 2
        %v249 = vpop.permute.xlu0 %248
        %251 = vst.msk [vmem:[%s197 + $0x1] sm:$0x1] %vm213, %v249
        %s252 = sshra.s32 %s243, 7
        %s253 = sand.u32 %s243, 127
        %s254 = sadd.s32 %s252, 1
        %s255 = smul.u32 %s254, 128
        %s256 = sshra.s32 %s243, 7
        %s257 = sand.u32 %s243, 127
        %s258 = sadd.s32 %s255, %s257
        %s259 = sld [smem:[#allocation3 + %s258]]
        %s260 = scalar_lea.vmem %s3, %s259
        %v261 = vld [vmem:[%s260] sm:$0x1]
        %263 = vrot.lane.b32.xlu0 %v261, 18
        %v264 = vpop.permute.xlu0 %263
        %266 = vst.msk [vmem:[%s197 + $0x1] sm:$0x1] %vm229, %v264
        %s267 = sadd.s32 %s252, 2
        %s268 = smul.u32 %s267, 128
        %s269 = sadd.s32 %s268, %s257
        %s270 = sld [smem:[#allocation3 + %s269]]
        %s271 = scalar_lea.vmem %s4, %s270
        %v272 = vld [vmem:[%s271] sm:$0x1]
        %274 = vrot.lane.b32.xlu0 %v272, 34
        %v275 = vpop.permute.xlu0 %274
        %277 = vst.msk [vmem:[%s197 + $0x1] sm:$0x1] %vm241, %v275
        %s278 = sadd.s32 %s202, 2
        %s279 = sld [smem:[#allocation3 + %s278]]
        %s280 = scalar_lea.vmem %s2, %s279
        %v281 = vld [vmem:[%s280] sm:$0x1]
        %283 = vrot.lane.b32.xlu0 %v281, 2
        %v284 = vpop.permute.xlu0 %283
        %286 = vst.msk [vmem:[%s197 + $0x2] sm:$0x1] %vm213, %v284
        %s287 = sshra.s32 %s278, 7
        %s288 = sand.u32 %s278, 127
        %s289 = sadd.s32 %s287, 1
        %s290 = smul.u32 %s289, 128
        %s291 = sshra.s32 %s278, 7
        %s292 = sand.u32 %s278, 127
        %s293 = sadd.s32 %s290, %s292
        %s294 = sld [smem:[#allocation3 + %s293]]
        %s295 = scalar_lea.vmem %s3, %s294
        %v296 = vld [vmem:[%s295] sm:$0x1]
        %298 = vrot.lane.b32.xlu0 %v296, 18
        %v299 = vpop.permute.xlu0 %298
        %301 = vst.msk [vmem:[%s197 + $0x2] sm:$0x1] %vm229, %v299
        %s302 = sadd.s32 %s287, 2
        %s303 = smul.u32 %s302, 128
        %s304 = sadd.s32 %s303, %s292
        %s305 = sld [smem:[#allocation3 + %s304]]
        %s306 = scalar_lea.vmem %s4, %s305
        %v307 = vld [vmem:[%s306] sm:$0x1]
        %309 = vrot.lane.b32.xlu0 %v307, 34
        %v310 = vpop.permute.xlu0 %309
        %312 = vst.msk [vmem:[%s197 + $0x2] sm:$0x1] %vm241, %v310
        %s313 = sadd.s32 %s202, 3
        %s314 = sld [smem:[#allocation3 + %s313]]
        %s315 = scalar_lea.vmem %s2, %s314
        %v316 = vld [vmem:[%s315] sm:$0x1]
        %318 = vrot.lane.b32.xlu0 %v316, 2
        %v319 = vpop.permute.xlu0 %318
        %321 = vst.msk [vmem:[%s197 + $0x3] sm:$0x1] %vm213, %v319
        %s322 = sshra.s32 %s313, 7
        %s323 = sand.u32 %s313, 127
        %s324 = sadd.s32 %s322, 1
        %s325 = smul.u32 %s324, 128
        %s326 = sshra.s32 %s313, 7
        %s327 = sand.u32 %s313, 127
        %s328 = sadd.s32 %s325, %s327
        %s329 = sld [smem:[#allocation3 + %s328]]
        %s330 = scalar_lea.vmem %s3, %s329
        %v331 = vld [vmem:[%s330] sm:$0x1]
        %333 = vrot.lane.b32.xlu0 %v331, 18
        %v334 = vpop.permute.xlu0 %333
        %336 = vst.msk [vmem:[%s197 + $0x3] sm:$0x1] %vm229, %v334
        %s337 = sadd.s32 %s322, 2
        %s338 = smul.u32 %s337, 128
        %s339 = sadd.s32 %s338, %s327
        %s340 = sld [smem:[#allocation3 + %s339]]
        %s341 = scalar_lea.vmem %s4, %s340
        %v342 = vld [vmem:[%s341] sm:$0x1]
        %344 = vrot.lane.b32.xlu0 %v342, 34
        %v345 = vpop.permute.xlu0 %344
        %347 = vst.msk [vmem:[%s197 + $0x3] sm:$0x1] %vm241, %v345
        %s348 = sadd.s32 %s202, 4
        %s349 = sld [smem:[#allocation3 + %s348]]
        %s350 = scalar_lea.vmem %s2, %s349
        %v351 = vld [vmem:[%s350] sm:$0x1]
        %353 = vrot.lane.b32.xlu0 %v351, 2
        %v354 = vpop.permute.xlu0 %353
        %356 = vst.msk [vmem:[%s197 + $0x4] sm:$0x1] %vm213, %v354
        %s357 = sshra.s32 %s348, 7
        %s358 = sand.u32 %s348, 127
        %s359 = sadd.s32 %s357, 1
        %s360 = smul.u32 %s359, 128
        %s361 = sshra.s32 %s348, 7
        %s362 = sand.u32 %s348, 127
        %s363 = sadd.s32 %s360, %s362
        %s364 = sld [smem:[#allocation3 + %s363]]
        %s365 = scalar_lea.vmem %s3, %s364
        %v366 = vld [vmem:[%s365] sm:$0x1]
        %368 = vrot.lane.b32.xlu0 %v366, 18
        %v369 = vpop.permute.xlu0 %368
        %371 = vst.msk [vmem:[%s197 + $0x4] sm:$0x1] %vm229, %v369
        %s372 = sadd.s32 %s357, 2
        %s373 = smul.u32 %s372, 128
        %s374 = sadd.s32 %s373, %s362
        %s375 = sld [smem:[#allocation3 + %s374]]
        %s376 = scalar_lea.vmem %s4, %s375
        %v377 = vld [vmem:[%s376] sm:$0x1]
        %379 = vrot.lane.b32.xlu0 %v377, 34
        %v380 = vpop.permute.xlu0 %379
        %382 = vst.msk [vmem:[%s197 + $0x4] sm:$0x1] %vm241, %v380
        %s383 = sadd.s32 %s202, 5
        %s384 = sld [smem:[#allocation3 + %s383]]
        %s385 = scalar_lea.vmem %s2, %s384
        %v386 = vld [vmem:[%s385] sm:$0x1]
        %388 = vrot.lane.b32.xlu0 %v386, 2
        %v389 = vpop.permute.xlu0 %388
        %391 = vst.msk [vmem:[%s197 + $0x5] sm:$0x1] %vm213, %v389
        %s392 = sshra.s32 %s383, 7
        %s393 = sand.u32 %s383, 127
        %s394 = sadd.s32 %s392, 1
        %s395 = smul.u32 %s394, 128
        %s396 = sshra.s32 %s383, 7
        %s397 = sand.u32 %s383, 127
        %s398 = sadd.s32 %s395, %s397
        %s399 = sld [smem:[#allocation3 + %s398]]
        %s400 = scalar_lea.vmem %s3, %s399
        %v401 = vld [vmem:[%s400] sm:$0x1]
        %403 = vrot.lane.b32.xlu0 %v401, 18
        %v404 = vpop.permute.xlu0 %403
        %406 = vst.msk [vmem:[%s197 + $0x5] sm:$0x1] %vm229, %v404
        %s407 = sadd.s32 %s392, 2
        %s408 = smul.u32 %s407, 128
        %s409 = sadd.s32 %s408, %s397
        %s410 = sld [smem:[#allocation3 + %s409]]
        %s411 = scalar_lea.vmem %s4, %s410
        %v412 = vld [vmem:[%s411] sm:$0x1]
        %414 = vrot.lane.b32.xlu0 %v412, 34
        %v415 = vpop.permute.xlu0 %414
        %417 = vst.msk [vmem:[%s197 + $0x5] sm:$0x1] %vm241, %v415
        %s418 = sadd.s32 %s202, 6
        %s419 = sld [smem:[#allocation3 + %s418]]
        %s420 = scalar_lea.vmem %s2, %s419
        %v421 = vld [vmem:[%s420] sm:$0x1]
        %423 = vrot.lane.b32.xlu0 %v421, 2
        %v424 = vpop.permute.xlu0 %423
        %426 = vst.msk [vmem:[%s197 + $0x6] sm:$0x1] %vm213, %v424
        %s427 = sshra.s32 %s418, 7
        %s428 = sand.u32 %s418, 127
        %s429 = sadd.s32 %s427, 1
        %s430 = smul.u32 %s429, 128
        %s431 = sshra.s32 %s418, 7
        %s432 = sand.u32 %s418, 127
        %s433 = sadd.s32 %s430, %s432
        %s434 = sld [smem:[#allocation3 + %s433]]
        %s435 = scalar_lea.vmem %s3, %s434
        %v436 = vld [vmem:[%s435] sm:$0x1]
        %438 = vrot.lane.b32.xlu0 %v436, 18
        %v439 = vpop.permute.xlu0 %438
        %441 = vst.msk [vmem:[%s197 + $0x6] sm:$0x1] %vm229, %v439
        %s442 = sadd.s32 %s427, 2
        %s443 = smul.u32 %s442, 128
        %s444 = sadd.s32 %s443, %s432
        %s445 = sld [smem:[#allocation3 + %s444]]
        %s446 = scalar_lea.vmem %s4, %s445
        %v447 = vld [vmem:[%s446] sm:$0x1]
        %449 = vrot.lane.b32.xlu0 %v447, 34
        %v450 = vpop.permute.xlu0 %449
        %452 = vst.msk [vmem:[%s197 + $0x6] sm:$0x1] %vm241, %v450
        %s453 = sadd.s32 %s202, 7
        %s454 = sld [smem:[#allocation3 + %s453]]
        %s455 = scalar_lea.vmem %s2, %s454
        %v456 = vld [vmem:[%s455] sm:$0x1]
        %458 = vrot.lane.b32.xlu0 %v456, 2
        %v459 = vpop.permute.xlu0 %458
        %461 = vst.msk [vmem:[%s197 + $0x7] sm:$0x1] %vm213, %v459
        %s462 = sshra.s32 %s453, 7
        %s463 = sand.u32 %s453, 127
        %s464 = sadd.s32 %s462, 1
        %s465 = smul.u32 %s464, 128
        %s466 = sshra.s32 %s453, 7
        %s467 = sand.u32 %s453, 127
        %s468 = sadd.s32 %s465, %s467
        %s469 = sld [smem:[#allocation3 + %s468]]
        %s470 = scalar_lea.vmem %s3, %s469
        %v471 = vld [vmem:[%s470] sm:$0x1]
        %473 = vrot.lane.b32.xlu0 %v471, 18
        %v474 = vpop.permute.xlu0 %473
        %476 = vst.msk [vmem:[%s197 + $0x7] sm:$0x1] %vm229, %v474
        %s477 = sadd.s32 %s462, 2
        %s478 = smul.u32 %s477, 128
        %s479 = sadd.s32 %s478, %s467
        %s480 = sld [smem:[#allocation3 + %s479]]
        %s481 = scalar_lea.vmem %s4, %s480
        %v482 = vld [vmem:[%s481] sm:$0x1]
        %484 = vrot.lane.b32.xlu0 %v482, 34
        %v485 = vpop.permute.xlu0 %484
        %487 = vst.msk [vmem:[%s197 + $0x7] sm:$0x1] %vm241, %v485
        %s488 = sand.u32 %s124, 1
        %s489 = scalar_lea.sflag [#allocation5], %s488
        %s490 = sand.u32 %s124, 1
        %s491 = smul.addr %s490, 8
        %s492 = scalar_lea.vmem [#allocation4], %s491
        // Predicated region
        $region37: #{tpu_custom_call.1} parent=35 // pred_check
          %p493 = pneg %p134
        $region38: #{tpu_custom_call.1} parent=35 // pred_check_branch
          %495 = sbr.rel (%p493) target = $region40
        $region39: #{tpu_custom_call.1} parent=35 // pred_region
          %497 = vsyncadd %s489, 0
          %s498 = smul.addr %s27, 8
          %s499 = scalar_lea.hbm %s5, %s498
          %s501 = sshll.u32 %s492, 4
          %s502 = int_to_ptr.vmem [resolvable:$true] %s501
          %s503 = sshll.u32 %s499, 4
          %s504 = int_to_ptr.hbm [resolvable:$true] %s503
          %506 = dma.vmem_to_hbm [thread:$0]  %s502, 128, %s504, %s489
        $region40: #{tpu_custom_call.1} parent=35 // pred_fallthru
          _
      $region36: #{tpu_custom_call.1} parent=5 // pred_fallthru
        _
      %p507 = scmp.le.s32.totalorder 2, %s22
      // Predicated region
      $region41: #{tpu_custom_call.1} parent=5 // pred_check
        %p508 = pneg %p507
      $region42: #{tpu_custom_call.1} parent=5 // pred_check_branch
        %510 = sbr.rel (%p508) target = $region44
      $region43: #{tpu_custom_call.1} parent=5 // pred_region
        %s511 = ssub.s32 %s22, 2
        // Predicated region
        $region45: #{tpu_custom_call.1} parent=43 // pred_check
          %p512 = pneg %p140
        $region46: #{tpu_custom_call.1} parent=43 // pred_check_branch
          %514 = sbr.rel (%p512) target = $region48
        $region47: #{tpu_custom_call.1} parent=43 // pred_region
          %s515 = sand.u32 %s125, 1
          %s516 = scalar_lea.sflag [#allocation5], %s515
          %s517 = sand.u32 %s125, 1
          %s518 = smul.addr %s517, 8
          %s519 = scalar_lea.vmem [#allocation4], %s518
          %521 = dma.done %s516, 128
        $region48: #{tpu_custom_call.1} parent=43 // pred_fallthru
          _
      $region44: #{tpu_custom_call.1} parent=5 // pred_fallthru
        _
    $region6: #{tpu_custom_call.1} parent=1 // loop_footer
      %s26 = sadd.s32 1, %s22
    $region7: #{tpu_custom_call.1} parent=1 // loop_footer_branch
      %21 = sbr.rel target = $region3
    $region8: #{tpu_custom_call.1} parent=1 // loop_exit
      _
    %522 = vsyncpa [#allocation5], 1
    %s523 = scalar_lea.sflag [#allocation5], 1
    %524 = vsyncpa %s523, 1

</llo_original>
